<compile_context>
chip_gen: v6e
topology: v6e:2x2x1
jax: 0.10.0
libtpu: 0.0.40
codegen_flags: <defaults>
</compile_context>

<pallas_src>
import functools

import jax
import jax.numpy as jnp
from jax.experimental import pallas as pl
from jax.experimental.pallas import tpu as pltpu

# Module hyper-parameters (nn.Linear sizes from __init__ defaults).
IN_ = 32
OUT_ = 16
HID = 64
HID2 = 32
HID3 = 100
HID3_PAD = 128          # lane/sublane-friendly padded width for the LN layer
LN_EPS = 1e-5
LANE = 128


def _round_up(x, m):
    return (x + m - 1) // m * m


def _thdlin_kernel(
    x_ref,                      # (bt, IN_)         batch-major input tile
    wf_ref, bf_ref,             # (HID2, IN_), (HID2, 1)      fused fc11*fc12
    w13_ref, b13_ref,           # (HID3_PAD, HID2), (HID3_PAD, 1)  fc13, zero-padded
    w14_ref, b14_ref,           # (OUT_, HID3_PAD), (OUT_, 1)      fc14 w/ LN affine folded
    mask_ref,                   # (HID3_PAD, 1)     1.0 for rows < HID3, else 0.0
    o_ref,                      # (OUT_, bt)        batch on lanes (lane-dense)
    *, matmul_dtype,
):
    md = matmul_dtype

    # f2 = relu(Wf @ x^T + bf).  Contraction on the feature dim of BOTH
    # operands (the Q@K^T dot_general form) so the wrapper never transposes x;
    # the narrow 32-wide swizzle happens in-kernel on the XLU.
    f2 = jnp.maximum(
        jax.lax.dot_general(
            wf_ref[...], x_ref[...].astype(md),
            dimension_numbers=(((1,), (1,)), ((), ())),
            preferred_element_type=jnp.float32,
        ) + bf_ref[...],
        0.0,
    )                                                           # (HID2, bt) f32

    # dp1: Dropout(0.3) — identity in eval mode.
    # TODO(synk): training-mode dropout (pltpu.prng_* mask) not implemented.

    # f3 = fc13(f2) + fc13_b.  Rows >= HID3 are exactly zero by construction
    # (zero weight rows, zero bias entries).
    f3 = jnp.dot(w13_ref[...], f2.astype(md),
                 preferred_element_type=jnp.float32) + b13_ref[...]   # (128, bt)

    # LayerNorm(hid3): stats over the true 100 features only (batch on lanes,
    # so stats are per-column).  mask zeroes the padded rows out of the
    # variance with a single broadcast multiply.
    mu = jnp.sum(f3, axis=0, keepdims=True) * (1.0 / HID3)            # (1, bt)
    d = (f3 - mu) * mask_ref[...]                                     # (128, bt)
    var = jnp.sum(d * d, axis=0, keepdims=True) * (1.0 / HID3)        # (1, bt)
    inv = jax.lax.rsqrt(var + LN_EPS)                                 # (1, bt)

    # dp2: Dropout(0.3) — identity in eval mode.

    # fc14 with the LayerNorm affine folded in (W14' = W14*gamma, b14' = W14@beta + b14).
    # The per-sample inv scale is applied AFTER the matmul on the 8x-smaller
    # (OUT_, bt) result (per-lane scaling commutes with the row contraction).
    y = jnp.dot(w14_ref[...], d.astype(md),
                preferred_element_type=jnp.float32)                   # (OUT_, bt)
    o_ref[...] = (y * inv + b14_ref[...]).astype(o_ref.dtype)


def _prepare_params(params, matmul_dtype):
    """One-time algebraic folds (in f32), hid3 zero-padding 100->128, and cast
    of matmul weights to the MXU dtype.  Weights stay PyTorch-native [out, in]."""
    f32 = jnp.float32

    def col(v):                                   # (n,) -> (n, 1) f32 column
        return v.reshape(-1, 1).astype(f32)

    # Fold fc11 into fc12 (no nonlinearity in between).
    w11 = params["w11"].astype(f32)
    w12 = params["w12"].astype(f32)
    wf = jnp.dot(w12, w11, preferred_element_type=f32)                # (HID2, IN_)
    bf = (jnp.dot(w12, (params["b11"] + params["b11x"]).astype(f32))
          + params["b12"] + params["b12x"])                            # (HID2,)

    # fc13: fold extra bias, zero-pad hid3 100 -> 128.
    pad3 = HID3_PAD - HID3
    w13p = jnp.pad(params["w13"].astype(f32), ((0, pad3), (0, 0)))     # (128, HID2)
    b13p = jnp.pad((params["b13"] + params["b13x"]).astype(f32), ((0, pad3),))

    # Fold the LayerNorm affine into fc14.
    w14 = params["w14"].astype(f32)
    w14g = w14 * params["gamma"][None, :].astype(f32)                  # scale columns
    b14f = jnp.dot(w14, params["beta"].astype(f32)) + params["b14"].astype(f32)
    w14gp = jnp.pad(w14g, ((0, 0), (0, pad3)))                         # (OUT_, 128)

    # 0/1 column masking the padded LN rows out of the variance.
    mask = (jnp.arange(HID3_PAD) < HID3).astype(f32).reshape(-1, 1)

    wd = matmul_dtype
    return (wf.astype(wd), col(bf),
            w13p.astype(wd), col(b13p),
            w14gp.astype(wd), col(b14f),
            mask)


@functools.partial(jax.jit, static_argnames=("batch_tile", "matmul_dtype"))
def thdlin_forward(x, params, *, batch_tile=2048, matmul_dtype=jnp.bfloat16):
    """x: (B, in_) float32.  params: dict of PyTorch-native weights (see init_params).

    batch_tile is a tuning knob (sweep 2048..8192 at large B); intermediates at
    bt=8192 are still only ~4 MiB each, inside every generation's scoped VMEM.
    """
    B, in_ = x.shape
    assert in_ == IN_

    # Batch-on-lanes tiling: lane-dense tiles (multiples of 128).
    B_lanes = _round_up(B, LANE)
    bt = min(batch_tile, B_lanes)
    if B_lanes > LANE:
        # Keep >= 2 grid steps so dimension_semantics=("parallel",) can place
        # one half on each v7x TensorCore; harmless on 1-TC v5e/v6e.
        bt = min(bt, _round_up((B_lanes + 1) // 2, LANE))
    bt = _round_up(max(bt, LANE), LANE)
    Bp = _round_up(B, bt)

    # No wrapper-side transpose; cast to the MXU dtype so the dominant per-step
    # input DMA is halved on the bf16 path.  Ragged batches are zero-padded.
    x_in = x.astype(matmul_dtype)
    if Bp != B:
        x_in = jnp.pad(x_in, ((0, Bp - B), (0, 0)))

    operands = (x_in,) + _prepare_params(params, matmul_dtype)

    def full_spec(a):
        # Small parameter arrays: one full block, constant index.
        return pl.BlockSpec(a.shape, lambda i: (0, 0))

    in_specs = [pl.BlockSpec((bt, IN_), lambda i: (i, 0))]
    in_specs += [full_spec(a) for a in operands[1:]]

    out_t = pl.pallas_call(
        functools.partial(_thdlin_kernel, matmul_dtype=matmul_dtype),
        out_shape=jax.ShapeDtypeStruct((OUT_, Bp), jnp.float32),
        grid=(Bp // bt,),
        in_specs=in_specs,
        out_specs=pl.BlockSpec((OUT_, bt), lambda i: (0, i)),
        compiler_params=pltpu.CompilerParams(
            dimension_semantics=("parallel",),
        ),
    )(*operands)

    # Slice the padded batch columns off first, then do the small transpose.
    return out_t[:, :B].T                                            # (B, OUT_)


def init_params(key):
    """Deterministic init mimicking nn.Linear defaults (U(-1/sqrt(fan_in), +)).
    Weights stored PyTorch-native [out, in]; extra biases fc1{1,2,3}_b zeros,
    LayerNorm gamma=1 beta=0 (as in __init__)."""
    ks = jax.random.split(key, 8)

    def linear(kw, kb, fan_in, fan_out):
        bound = 1.0 / jnp.sqrt(jnp.float32(fan_in))
        w = jax.random.uniform(kw, (fan_out, fan_in), jnp.float32, -bound, bound)
        b = jax.random.uniform(kb, (fan_out,), jnp.float32, -bound, bound)
        return w, b

    w11, b11 = linear(ks[0], ks[1], IN_, HID)
    w12, b12 = linear(ks[2], ks[3], HID, HID2)
    w13, b13 = linear(ks[4], ks[5], HID2, HID3)
    w14, b14 = linear(ks[6], ks[7], HID3, OUT_)

    return {
        "w11": w11, "b11": b11, "b11x": jnp.zeros((HID,), jnp.float32),
        "w12": w12, "b12": b12, "b12x": jnp.zeros((HID2,), jnp.float32),
        "w13": w13, "b13": b13, "b13x": jnp.zeros((HID3,), jnp.float32),
        "gamma": jnp.ones((HID3,), jnp.float32),
        "beta": jnp.zeros((HID3,), jnp.float32),
        "w14": w14, "b14": b14,
    }


def _reference(x, p):
    """Pure-f32 JAX reference with identical forward semantics to the module."""
    f1 = x @ p["w11"].T + p["b11"] + p["b11x"]
    f2 = jnp.maximum(f1 @ p["w12"].T + p["b12"] + p["b12x"], 0.0)
    f3 = f2 @ p["w13"].T + p["b13"] + p["b13x"]
    mu = jnp.mean(f3, axis=-1, keepdims=True)
    var = jnp.mean((f3 - mu) ** 2, axis=-1, keepdims=True)
    bn = (f3 - mu) / jnp.sqrt(var + LN_EPS) * p["gamma"] + p["beta"]
    return bn @ p["w14"].T + p["b14"]


if __name__ == "__main__":
    key = jax.random.PRNGKey(0)
    kx, kp, kg = jax.random.split(key, 3)
    params = init_params(kp)

    # Non-trivial LayerNorm affine and extra biases so the algebraic folds
    # (fc11*fc12 fold, gamma/beta->fc14 fold, bias folds) are actually exercised.
    kk = jax.random.split(kg, 5)
    params["gamma"] = 1.0 + 0.2 * jax.random.normal(kk[0], (HID3,), jnp.float32)
    params["beta"] = 0.3 * jax.random.normal(kk[1], (HID3,), jnp.float32)
    params["b11x"] = 0.05 * jax.random.normal(kk[2], (HID,), jnp.float32)
    params["b12x"] = 0.05 * jax.random.normal(kk[3], (HID2,), jnp.float32)
    params["b13x"] = 0.05 * jax.random.normal(kk[4], (HID3,), jnp.float32)

    # Small single-tile case.
    B = 16
    x = jax.random.normal(kx, (B, IN_), dtype=jnp.float32)
    ref = _reference(x, params)

    # Exact-semantics check: f32 MXU operands.
    out_f32 = jax.block_until_ready(
        thdlin_forward(x, params, matmul_dtype=jnp.float32))
    assert out_f32.shape == (B, OUT_)
    assert jnp.allclose(out_f32, ref, atol=2e-4, rtol=2e-4), "f32 mismatch vs reference"

    # Default performance path: bf16 MXU operands, f32 accumulation.
    out_bf16 = jax.block_until_ready(thdlin_forward(x, params))
    assert out_bf16.shape == (B, OUT_)
    assert jnp.allclose(out_bf16, ref, atol=5e-2, rtol=5e-2), "bf16 mismatch vs reference"

    # Multi-step grid with a ragged batch remainder (3 grid steps, 700 -> 768 pad),
    # exercising padding/slicing and the "parallel" multi-step path.
    B2 = 700
    x2 = jax.random.normal(jax.random.fold_in(kx, 1), (B2, IN_), dtype=jnp.float32)
    ref2 = _reference(x2, params)
    out2 = jax.block_until_ready(
        thdlin_forward(x2, params, batch_tile=256, matmul_dtype=jnp.float32))
    assert out2.shape == (B2, OUT_)
    assert jnp.allclose(out2, ref2, atol=2e-4, rtol=2e-4), "multi-step mismatch vs reference"

    print("KERNEL_OK")
</pallas_src>

<mosaic_0001>
module attributes {stable_mosaic.version = 11 : i64} {
  func.func @_thdlin_kernel(%arg0: i32, %arg1: memref<128x32xf32, #tpu.memory_space<vmem>>, %arg2: memref<32x32xf32, #tpu.memory_space<vmem>>, %arg3: memref<32x1xf32, #tpu.memory_space<vmem>>, %arg4: memref<128x32xf32, #tpu.memory_space<vmem>>, %arg5: memref<128x1xf32, #tpu.memory_space<vmem>>, %arg6: memref<16x128xf32, #tpu.memory_space<vmem>>, %arg7: memref<16x1xf32, #tpu.memory_space<vmem>>, %arg8: memref<128x1xf32, #tpu.memory_space<vmem>>, %arg9: memref<16x128xf32, #tpu.memory_space<vmem>>) attributes {dimension_semantics = [#tpu.dimension_semantics<parallel>], iteration_bounds = array<i64: 1>, scalar_prefetch = 0 : i64, scratch_operands = 0 : i64, tpu.core_type = #tpu.core_type<tc>, window_params = [{transform_indices = @transform_0, window_bounds = array<i64: 128, 32>}, {pipeline_mode = #tpu.pipeline_mode<synchronous>, transform_indices = @transform_1, window_bounds = array<i64: 32, 32>}, {pipeline_mode = #tpu.pipeline_mode<synchronous>, transform_indices = @transform_2, window_bounds = array<i64: 32, 1>}, {pipeline_mode = #tpu.pipeline_mode<synchronous>, transform_indices = @transform_3, window_bounds = array<i64: 128, 32>}, {pipeline_mode = #tpu.pipeline_mode<synchronous>, transform_indices = @transform_4, window_bounds = array<i64: 128, 1>}, {pipeline_mode = #tpu.pipeline_mode<synchronous>, transform_indices = @transform_5, window_bounds = array<i64: 16, 128>}, {pipeline_mode = #tpu.pipeline_mode<synchronous>, transform_indices = @transform_6, window_bounds = array<i64: 16, 1>}, {pipeline_mode = #tpu.pipeline_mode<synchronous>, transform_indices = @transform_7, window_bounds = array<i64: 128, 1>}, {transform_indices = @transform_8, window_bounds = array<i64: 16, 128>}]} {
    %c0 = arith.constant 0 : index
    %c0_0 = arith.constant 0 : index
    %0 = vector.load %arg2[%c0, %c0_0] : memref<32x32xf32, #tpu.memory_space<vmem>>, vector<32x32xf32>
    %c0_1 = arith.constant 0 : index
    %c0_2 = arith.constant 0 : index
    %1 = vector.load %arg1[%c0_1, %c0_2] : memref<128x32xf32, #tpu.memory_space<vmem>>, vector<128x32xf32>
    %cst = arith.constant dense<0.000000e+00> : vector<32x128xf32>
    %2 = tpu.matmul %0, %1, %cst {dimension_numbers = #tpu.dot_dimension_numbers<[1], [1], [0], [0], [0, 0, 1, 0], [], []>} : vector<32x32xf32>, vector<128x32xf32>, vector<32x128xf32> -> vector<32x128xf32>
    %c0_3 = arith.constant 0 : index
    %c0_4 = arith.constant 0 : index
    %3 = vector.load %arg3[%c0_3, %c0_4] : memref<32x1xf32, #tpu.memory_space<vmem>>, vector<32x1xf32>
    %4 = vector.broadcast %3 : vector<32x1xf32> to vector<32x128xf32>
    %5 = arith.addf %2, %4 : vector<32x128xf32>
    %cst_5 = arith.constant 0.000000e+00 : f32
    %6 = vector.broadcast %cst_5 : f32 to vector<32x128xf32>
    %7 = arith.maximumf %5, %6 : vector<32x128xf32>
    %c0_6 = arith.constant 0 : index
    %c0_7 = arith.constant 0 : index
    %8 = vector.load %arg4[%c0_6, %c0_7] : memref<128x32xf32, #tpu.memory_space<vmem>>, vector<128x32xf32>
    %cst_8 = arith.constant dense<0.000000e+00> : vector<128x128xf32>
    %9 = tpu.matmul %8, %7, %cst_8 {dimension_numbers = #tpu.dot_dimension_numbers<[1], [0], [0], [1], [0, 0, 1, 1], [], []>} : vector<128x32xf32>, vector<32x128xf32>, vector<128x128xf32> -> vector<128x128xf32>
    %c0_9 = arith.constant 0 : index
    %c0_10 = arith.constant 0 : index
    %10 = vector.load %arg5[%c0_9, %c0_10] : memref<128x1xf32, #tpu.memory_space<vmem>>, vector<128x1xf32>
    %11 = vector.broadcast %10 : vector<128x1xf32> to vector<128x128xf32>
    %12 = arith.addf %9, %11 : vector<128x128xf32>
    %cst_11 = arith.constant dense<0.000000e+00> : vector<128xf32>
    %13 = vector.multi_reduction <add>, %12, %cst_11 [0] : vector<128x128xf32> to vector<128xf32>
    %14 = vector.shape_cast %13 : vector<128xf32> to vector<1x128xf32>
    %cst_12 = arith.constant 0.00999999977 : f32
    %15 = vector.broadcast %cst_12 : f32 to vector<1x128xf32>
    %16 = arith.mulf %14, %15 : vector<1x128xf32>
    %17 = vector.broadcast %16 : vector<1x128xf32> to vector<128x128xf32>
    %18 = arith.subf %12, %17 : vector<128x128xf32>
    %c0_13 = arith.constant 0 : index
    %c0_14 = arith.constant 0 : index
    %19 = vector.load %arg8[%c0_13, %c0_14] : memref<128x1xf32, #tpu.memory_space<vmem>>, vector<128x1xf32>
    %20 = vector.broadcast %19 : vector<128x1xf32> to vector<128x128xf32>
    %21 = arith.mulf %18, %20 : vector<128x128xf32>
    %22 = arith.mulf %21, %21 : vector<128x128xf32>
    %cst_15 = arith.constant dense<0.000000e+00> : vector<128xf32>
    %23 = vector.multi_reduction <add>, %22, %cst_15 [0] : vector<128x128xf32> to vector<128xf32>
    %24 = vector.shape_cast %23 : vector<128xf32> to vector<1x128xf32>
    %cst_16 = arith.constant 0.00999999977 : f32
    %25 = vector.broadcast %cst_16 : f32 to vector<1x128xf32>
    %26 = arith.mulf %24, %25 : vector<1x128xf32>
    %cst_17 = arith.constant 9.99999974E-6 : f32
    %27 = vector.broadcast %cst_17 : f32 to vector<1x128xf32>
    %28 = arith.addf %26, %27 : vector<1x128xf32>
    %29 = math.rsqrt %28 : vector<1x128xf32>
    %c0_18 = arith.constant 0 : index
    %c0_19 = arith.constant 0 : index
    %30 = vector.load %arg6[%c0_18, %c0_19] : memref<16x128xf32, #tpu.memory_space<vmem>>, vector<16x128xf32>
    %cst_20 = arith.constant dense<0.000000e+00> : vector<16x128xf32>
    %31 = tpu.matmul %30, %21, %cst_20 {dimension_numbers = #tpu.dot_dimension_numbers<[1], [0], [0], [1], [0, 0, 1, 1], [], []>} : vector<16x128xf32>, vector<128x128xf32>, vector<16x128xf32> -> vector<16x128xf32>
    %32 = vector.broadcast %29 : vector<1x128xf32> to vector<16x128xf32>
    %33 = arith.mulf %31, %32 : vector<16x128xf32>
    %c0_21 = arith.constant 0 : index
    %c0_22 = arith.constant 0 : index
    %34 = vector.load %arg7[%c0_21, %c0_22] : memref<16x1xf32, #tpu.memory_space<vmem>>, vector<16x1xf32>
    %35 = vector.broadcast %34 : vector<16x1xf32> to vector<16x128xf32>
    %36 = arith.addf %33, %35 : vector<16x128xf32>
    %c0_23 = arith.constant 0 : index
    %c0_24 = arith.constant 0 : index
    %37 = vector.load %arg9[%c0_23, %c0_24] : memref<16x128xf32, #tpu.memory_space<vmem>>, vector<16x128xf32>
    tpu.vector_store %arg9[%c0_23, %c0_24], %36 {strides = array<i32>} : memref<16x128xf32, #tpu.memory_space<vmem>>, vector<16x128xf32>,
    return
  }
  func.func @transform_0(%arg0: i32) -> (i32, i32) {
    %c0_i32 = arith.constant 0 : i32
    %c0_i32_0 = arith.constant 0 : i32
    return %arg0, %c0_i32 : i32, i32
  }
  func.func @transform_1(%arg0: i32) -> (i32, i32) {
    %c0_i32 = arith.constant 0 : i32
    %c0_i32_0 = arith.constant 0 : i32
    %c0_i32_1 = arith.constant 0 : i32
    return %c0_i32, %c0_i32_0 : i32, i32
  }
  func.func @transform_2(%arg0: i32) -> (i32, i32) {
    %c0_i32 = arith.constant 0 : i32
    %c0_i32_0 = arith.constant 0 : i32
    %c0_i32_1 = arith.constant 0 : i32
    return %c0_i32, %c0_i32_0 : i32, i32
  }
  func.func @transform_3(%arg0: i32) -> (i32, i32) {
    %c0_i32 = arith.constant 0 : i32
    %c0_i32_0 = arith.constant 0 : i32
    %c0_i32_1 = arith.constant 0 : i32
    return %c0_i32, %c0_i32_0 : i32, i32
  }
  func.func @transform_4(%arg0: i32) -> (i32, i32) {
    %c0_i32 = arith.constant 0 : i32
    %c0_i32_0 = arith.constant 0 : i32
    %c0_i32_1 = arith.constant 0 : i32
    return %c0_i32, %c0_i32_0 : i32, i32
  }
  func.func @transform_5(%arg0: i32) -> (i32, i32) {
    %c0_i32 = arith.constant 0 : i32
    %c0_i32_0 = arith.constant 0 : i32
    %c0_i32_1 = arith.constant 0 : i32
    return %c0_i32, %c0_i32_0 : i32, i32
  }
  func.func @transform_6(%arg0: i32) -> (i32, i32) {
    %c0_i32 = arith.constant 0 : i32
    %c0_i32_0 = arith.constant 0 : i32
    %c0_i32_1 = arith.constant 0 : i32
    return %c0_i32, %c0_i32_0 : i32, i32
  }
  func.func @transform_7(%arg0: i32) -> (i32, i32) {
    %c0_i32 = arith.constant 0 : i32
    %c0_i32_0 = arith.constant 0 : i32
    %c0_i32_1 = arith.constant 0 : i32
    return %c0_i32, %c0_i32_0 : i32, i32
  }
  func.func @transform_8(%arg0: i32) -> (i32, i32) {
    %c0_i32 = arith.constant 0 : i32
    %c0_i32_0 = arith.constant 0 : i32
    return %c0_i32, %arg0 : i32, i32
  }
}

</mosaic_0001>

<llo_original>
// kernel: thdlin_forward.1
$region0: #{thdlin_forward.1}
  #allocation0 [shape = 'u32[]', space=smem, size = 0x4, offset = 0x4, fixed_abs, tag = 'smem constant byte address 0x4 - core index']
  #allocation1 [shape = 'u32[144,128]{1,0:T(1,128)}', space=vmem, size = 0x12000, scoped, tag = 'internal scratch']
  %s0 = inlined_call_operand.vmem [shape: f32[128,32], index: 0, kind: input, shape index: {}]
  %s1 = inlined_call_operand.vmem [shape: f32[32,32], index: 1, kind: input, shape index: {}]
  %s2 = inlined_call_operand.vmem [shape: f32[32,1], index: 2, kind: input, shape index: {}]
  %s3 = inlined_call_operand.vmem [shape: f32[128,32], index: 3, kind: input, shape index: {}]
  %s4 = inlined_call_operand.vmem [shape: f32[128,1], index: 4, kind: input, shape index: {}]
  %s5 = inlined_call_operand.vmem [shape: f32[16,128], index: 5, kind: input, shape index: {}]
  %s6 = inlined_call_operand.vmem [shape: f32[16,1], index: 6, kind: input, shape index: {}]
  %s7 = inlined_call_operand.vmem [shape: f32[128,1], index: 7, kind: input, shape index: {}]
  %s8 = inlined_call_operand.vmem [shape: f32[16,128], index: 8, kind: output, shape index: {}]
  %s9 = sld [smem:[#allocation0]]
  $region42: #{thdlin_forward.1} parent=0
    _
  %s11 = ssub.s32 1, %s9
  %s12 = scalar_select 0, %s11, %s9
  // Predicated region
  $region2: #{thdlin_forward.1} parent=0 // pred_check
    _
  $region3: #{thdlin_forward.1} parent=0 // pred_check_branch
    %14 = sbr.rel (0) target = $region5
  $region4: #{thdlin_forward.1} parent=0 // pred_region
    _
  $region5: #{thdlin_forward.1} parent=0 // pred_fallthru
    _
  // Predicated region
  $region6: #{thdlin_forward.1} parent=0 // pred_check
    _
  $region7: #{thdlin_forward.1} parent=0 // pred_check_branch
    %16 = sbr.rel (0) target = $region9
  $region8: #{thdlin_forward.1} parent=0 // pred_region
    _
  $region9: #{thdlin_forward.1} parent=0 // pred_fallthru
    _
  // Predicated region
  $region10: #{thdlin_forward.1} parent=0 // pred_check
    _
  $region11: #{thdlin_forward.1} parent=0 // pred_check_branch
    %18 = sbr.rel (0) target = $region13
  $region12: #{thdlin_forward.1} parent=0 // pred_region
    _
  $region13: #{thdlin_forward.1} parent=0 // pred_fallthru
    _
  // Predicated region
  $region14: #{thdlin_forward.1} parent=0 // pred_check
    _
  $region15: #{thdlin_forward.1} parent=0 // pred_check_branch
    %20 = sbr.rel (0) target = $region17
  $region16: #{thdlin_forward.1} parent=0 // pred_region
    _
  $region17: #{thdlin_forward.1} parent=0 // pred_fallthru
    _
  // Predicated region
  $region18: #{thdlin_forward.1} parent=0 // pred_check
    _
  $region19: #{thdlin_forward.1} parent=0 // pred_check_branch
    %22 = sbr.rel (0) target = $region21
  $region20: #{thdlin_forward.1} parent=0 // pred_region
    _
  $region21: #{thdlin_forward.1} parent=0 // pred_fallthru
    _
  // Predicated region
  $region22: #{thdlin_forward.1} parent=0 // pred_check
    _
  $region23: #{thdlin_forward.1} parent=0 // pred_check_branch
    %24 = sbr.rel (0) target = $region25
  $region24: #{thdlin_forward.1} parent=0 // pred_region
    _
  $region25: #{thdlin_forward.1} parent=0 // pred_fallthru
    _
  // Predicated region
  $region26: #{thdlin_forward.1} parent=0 // pred_check
    _
  $region27: #{thdlin_forward.1} parent=0 // pred_check_branch
    %26 = sbr.rel (0) target = $region29
  $region28: #{thdlin_forward.1} parent=0 // pred_region
    _
  $region29: #{thdlin_forward.1} parent=0 // pred_fallthru
    _
  // Predicated region
  $region30: #{thdlin_forward.1} parent=0 // pred_check
    _
  $region31: #{thdlin_forward.1} parent=0 // pred_check_branch
    %28 = sbr.rel (0) target = $region33
  $region32: #{thdlin_forward.1} parent=0 // pred_region
    _
  $region33: #{thdlin_forward.1} parent=0 // pred_fallthru
    _
  %v29 = vld [vmem:[%s1] sm:$0xff]
  %v30 = vld [vmem:[%s1 + $0x8] sm:$0xff]
  %v31 = vld [vmem:[%s1 + $0x10] sm:$0xff]
  %v32 = vld [vmem:[%s1 + $0x18] sm:$0xff]
  %v33 = vld [vmem:[%s0] sm:$0xff]
  %v34 = vld [vmem:[%s0 + $0x8] sm:$0xff]
  %v35 = vld [vmem:[%s0 + $0x10] sm:$0xff]
  %v36 = vld [vmem:[%s0 + $0x18] sm:$0xff]
  %v37 = vld [vmem:[%s0 + $0x20] sm:$0xff]
  %v38 = vld [vmem:[%s0 + $0x28] sm:$0xff]
  %v39 = vld [vmem:[%s0 + $0x30] sm:$0xff]
  %v40 = vld [vmem:[%s0 + $0x38] sm:$0xff]
  %v41 = vld [vmem:[%s0 + $0x40] sm:$0xff]
  %v42 = vld [vmem:[%s0 + $0x48] sm:$0xff]
  %v43 = vld [vmem:[%s0 + $0x50] sm:$0xff]
  %v44 = vld [vmem:[%s0 + $0x58] sm:$0xff]
  %v45 = vld [vmem:[%s0 + $0x60] sm:$0xff]
  %v46 = vld [vmem:[%s0 + $0x68] sm:$0xff]
  %v47 = vld [vmem:[%s0 + $0x70] sm:$0xff]
  %v48 = vld [vmem:[%s0 + $0x78] sm:$0xff]
  %v49 = vld [vmem:[%s2] sm:$0xff]
  %v50 = vld [vmem:[%s2 + $0x8] sm:$0xff]
  %v51 = vld [vmem:[%s2 + $0x10] sm:$0xff]
  %v52 = vld [vmem:[%s2 + $0x18] sm:$0xff]
  %54 = vset.pattern.permute.xlu0 0
  %55 = vperm.xlu0 %54, %v49
  %v56 = vpop.permute.xlu0 %55
  %59 = vset.pattern.permute.xlu0 0
  %60 = vperm.xlu0 %59, %v50
  %v61 = vpop.permute.xlu0 %60
  %64 = vset.pattern.permute.xlu0 0
  %65 = vperm.xlu0 %64, %v51
  %v66 = vpop.permute.xlu0 %65
  %69 = vset.pattern.permute.xlu0 0
  %70 = vperm.xlu0 %69, %v52
  %v71 = vpop.permute.xlu0 %70
  %vm73 = vcmask 261120
  %v75 = vsel %vm73, %v29, 0
  %v78 = vsel %vm73, %v30, 0
  %v81 = vsel %vm73, %v31, 0
  %v84 = vsel %vm73, %v32, 0
  %v87 = vsel %vm73, %v33, 0
  %v90 = vsel %vm73, %v34, 0
  %v93 = vsel %vm73, %v35, 0
  %v96 = vsel %vm73, %v36, 0
  %v99 = vsel %vm73, %v37, 0
  %v102 = vsel %vm73, %v38, 0
  %v105 = vsel %vm73, %v39, 0
  %v108 = vsel %vm73, %v40, 0
  %v111 = vsel %vm73, %v41, 0
  %v114 = vsel %vm73, %v42, 0
  %v117 = vsel %vm73, %v43, 0
  %v120 = vsel %vm73, %v44, 0
  %v123 = vsel %vm73, %v45, 0
  %v126 = vsel %vm73, %v46, 0
  %v129 = vsel %vm73, %v47, 0
  %v132 = vsel %vm73, %v48, 0
  %134 = vmatprep.subr.mxu0 0.0
  %135 = vmatpush1.xpose.msra.mxu0 %v132
  %136 = vmatprep.subr.mxu0 0.0
  %137 = vmatpush1.xpose.msra.mxu0 %v129
  %138 = vmatprep.subr.mxu0 0.0
  %139 = vmatpush1.xpose.msra.mxu0 %v126
  %140 = vmatprep.subr.mxu0 0.0
  %141 = vmatpush1.xpose.msra.mxu0 %v123
  %142 = vmatprep.subr.mxu0 0.0
  %143 = vmatpush1.xpose.msra.mxu0 %v120
  %144 = vmatprep.subr.mxu0 0.0
  %145 = vmatpush1.xpose.msra.mxu0 %v117
  %146 = vmatprep.subr.mxu0 0.0
  %147 = vmatpush1.xpose.msra.mxu0 %v114
  %148 = vmatprep.subr.mxu0 0.0
  %149 = vmatpush1.xpose.msra.mxu0 %v111
  %150 = vmatprep.subr.mxu0 0.0
  %151 = vmatpush1.xpose.msra.mxu0 %v108
  %152 = vmatprep.subr.mxu0 0.0
  %153 = vmatpush1.xpose.msra.mxu0 %v105
  %154 = vmatprep.subr.mxu0 0.0
  %155 = vmatpush1.xpose.msra.mxu0 %v102
  %156 = vmatprep.subr.mxu0 0.0
  %157 = vmatpush1.xpose.msra.mxu0 %v99
  %158 = vmatprep.subr.mxu0 0.0
  %159 = vmatpush1.xpose.msra.mxu0 %v96
  %160 = vmatprep.subr.mxu0 0.0
  %161 = vmatpush1.xpose.msra.mxu0 %v93
  %162 = vmatprep.subr.mxu0 0.0
  %163 = vmatpush1.xpose.msra.mxu0 %v90
  %164 = vmatprep.subr.mxu0 0.0
  %165 = vmatpush1.xpose.msra.mxu0 %v87
  %166 = vmatprep.subr.mxu0 0.0
  %167 = vmatpush2.xpose.msra.mxu0 0.0
  %168 = vmatprep.subr.mxu0 0.0
  %169 = vmatpush2.xpose.msra.mxu0 0.0
  %170 = vmatprep.subr.mxu0 0.0
  %171 = vmatpush2.xpose.msra.mxu0 0.0
  %172 = vmatprep.subr.mxu0 0.0
  %173 = vmatpush2.xpose.msra.mxu0 0.0
  %174 = vmatprep.subr.mxu0 0.0
  %175 = vmatpush2.xpose.msra.mxu0 0.0
  %176 = vmatprep.subr.mxu0 0.0
  %177 = vmatpush2.xpose.msra.mxu0 0.0
  %178 = vmatprep.subr.mxu0 0.0
  %179 = vmatpush2.xpose.msra.mxu0 0.0
  %180 = vmatprep.subr.mxu0 0.0
  %181 = vmatpush2.xpose.msra.mxu0 0.0
  %182 = vmatprep.subr.mxu0 0.0
  %183 = vmatpush2.xpose.msra.mxu0 0.0
  %184 = vmatprep.subr.mxu0 0.0
  %185 = vmatpush2.xpose.msra.mxu0 0.0
  %186 = vmatprep.subr.mxu0 0.0
  %187 = vmatpush2.xpose.msra.mxu0 0.0
  %188 = vmatprep.subr.mxu0 0.0
  %189 = vmatpush2.xpose.msra.mxu0 0.0
  %190 = vmatprep.subr.mxu0 0.0
  %191 = vmatpush2.xpose.msra.mxu0 0.0
  %192 = vmatprep.subr.mxu0 0.0
  %193 = vmatpush2.xpose.msra.mxu0 0.0
  %194 = vmatprep.subr.mxu0 0.0
  %195 = vmatpush2.xpose.msra.mxu0 0.0
  %196 = vmatprep.subr.mxu0 0.0
  %197 = vmatpush2.xpose.msra.mxu0 0.0
  %198 = vmatprep.mubr.f32.mxu0 0.0
  %199 = vmatmul.mubr.f32.gmra.mxu0 %v75
  %v200 = vpop.f32.mrf.mxu0
  %v201 = vadd.f32 %v56, %v200
  %v202 = vpop.f32.mrf.mxu0
  %203 = vmatprep.mubr.f32.mxu0 0.0
  %204 = vmatmul.mubr.f32.gmra.mxu0 %v78
  %v205 = vpop.f32.mrf.mxu0
  %v206 = vadd.f32 %v61, %v205
  %v207 = vpop.f32.mrf.mxu0
  %208 = vmatprep.mubr.f32.mxu0 0.0
  %209 = vmatmul.mubr.f32.gmra.mxu0 %v81
  %v210 = vpop.f32.mrf.mxu0
  %v211 = vadd.f32 %v66, %v210
  %v212 = vpop.f32.mrf.mxu0
  %213 = vmatprep.mubr.f32.mxu0 0.0
  %214 = vmatmul.mubr.f32.gmra.mxu0 %v84
  %v215 = vpop.f32.mrf.mxu0
  %v216 = vadd.f32 %v71, %v215
  %v217 = vpop.f32.mrf.mxu0
  %218 = vdwg.mxu0
  %v219 = vmax.f32 %v201, 0.0
  %v220 = vmax.f32 %v206, 0.0
  %v221 = vmax.f32 %v211, 0.0
  %v222 = vmax.f32 %v216, 0.0
  %v223 = vld [vmem:[%s3] sm:$0xff]
  %v224 = vld [vmem:[%s3 + $0x8] sm:$0xff]
  %v225 = vld [vmem:[%s3 + $0x10] sm:$0xff]
  %v226 = vld [vmem:[%s3 + $0x18] sm:$0xff]
  %v227 = vld [vmem:[%s3 + $0x20] sm:$0xff]
  %v228 = vld [vmem:[%s3 + $0x28] sm:$0xff]
  %v229 = vld [vmem:[%s3 + $0x30] sm:$0xff]
  %v230 = vld [vmem:[%s3 + $0x38] sm:$0xff]
  %v231 = vld [vmem:[%s3 + $0x40] sm:$0xff]
  %v232 = vld [vmem:[%s3 + $0x48] sm:$0xff]
  %v233 = vld [vmem:[%s3 + $0x50] sm:$0xff]
  %v234 = vld [vmem:[%s3 + $0x58] sm:$0xff]
  %v235 = vld [vmem:[%s3 + $0x60] sm:$0xff]
  %v236 = vld [vmem:[%s3 + $0x68] sm:$0xff]
  %v237 = vld [vmem:[%s3 + $0x70] sm:$0xff]
  %v238 = vld [vmem:[%s3 + $0x78] sm:$0xff]
  %v239 = vld [vmem:[%s4] sm:$0xff]
  %v240 = vld [vmem:[%s4 + $0x8] sm:$0xff]
  %v241 = vld [vmem:[%s4 + $0x10] sm:$0xff]
  %v242 = vld [vmem:[%s4 + $0x18] sm:$0xff]
  %v243 = vld [vmem:[%s4 + $0x20] sm:$0xff]
  %v244 = vld [vmem:[%s4 + $0x28] sm:$0xff]
  %v245 = vld [vmem:[%s4 + $0x30] sm:$0xff]
  %v246 = vld [vmem:[%s4 + $0x38] sm:$0xff]
  %v247 = vld [vmem:[%s4 + $0x40] sm:$0xff]
  %v248 = vld [vmem:[%s4 + $0x48] sm:$0xff]
  %v249 = vld [vmem:[%s4 + $0x50] sm:$0xff]
  %v250 = vld [vmem:[%s4 + $0x58] sm:$0xff]
  %v251 = vld [vmem:[%s4 + $0x60] sm:$0xff]
  %v252 = vld [vmem:[%s4 + $0x68] sm:$0xff]
  %v253 = vld [vmem:[%s4 + $0x70] sm:$0xff]
  %v254 = vld [vmem:[%s4 + $0x78] sm:$0xff]
  %256 = vset.pattern.permute.xlu0 0
  %257 = vperm.xlu0 %256, %v239
  %v258 = vpop.permute.xlu0 %257
  %261 = vset.pattern.permute.xlu0 0
  %262 = vperm.xlu0 %261, %v240
  %v263 = vpop.permute.xlu0 %262
  %266 = vset.pattern.permute.xlu0 0
  %267 = vperm.xlu0 %266, %v241
  %v268 = vpop.permute.xlu0 %267
  %271 = vset.pattern.permute.xlu0 0
  %272 = vperm.xlu0 %271, %v242
  %v273 = vpop.permute.xlu0 %272
  %276 = vset.pattern.permute.xlu0 0
  %277 = vperm.xlu0 %276, %v243
  %v278 = vpop.permute.xlu0 %277
  %281 = vset.pattern.permute.xlu0 0
  %282 = vperm.xlu0 %281, %v244
  %v283 = vpop.permute.xlu0 %282
  %286 = vset.pattern.permute.xlu0 0
  %287 = vperm.xlu0 %286, %v245
  %v288 = vpop.permute.xlu0 %287
  %291 = vset.pattern.permute.xlu0 0
  %292 = vperm.xlu0 %291, %v246
  %v293 = vpop.permute.xlu0 %292
  %296 = vset.pattern.permute.xlu0 0
  %297 = vperm.xlu0 %296, %v247
  %v298 = vpop.permute.xlu0 %297
  %301 = vset.pattern.permute.xlu0 0
  %302 = vperm.xlu0 %301, %v248
  %v303 = vpop.permute.xlu0 %302
  %306 = vset.pattern.permute.xlu0 0
  %307 = vperm.xlu0 %306, %v249
  %v308 = vpop.permute.xlu0 %307
  %311 = vset.pattern.permute.xlu0 0
  %312 = vperm.xlu0 %311, %v250
  %v313 = vpop.permute.xlu0 %312
  %316 = vset.pattern.permute.xlu0 0
  %317 = vperm.xlu0 %316, %v251
  %v318 = vpop.permute.xlu0 %317
  %321 = vset.pattern.permute.xlu0 0
  %322 = vperm.xlu0 %321, %v252
  %v323 = vpop.permute.xlu0 %322
  %326 = vset.pattern.permute.xlu0 0
  %327 = vperm.xlu0 %326, %v253
  %v328 = vpop.permute.xlu0 %327
  %331 = vset.pattern.permute.xlu0 0
  %332 = vperm.xlu0 %331, %v254
  %v333 = vpop.permute.xlu0 %332
  %v336 = vsel %vm73, %v223, 0
  %v339 = vsel %vm73, %v224, 0
  %v342 = vsel %vm73, %v225, 0
  %v345 = vsel %vm73, %v226, 0
  %v348 = vsel %vm73, %v227, 0
  %v351 = vsel %vm73, %v228, 0
  %v354 = vsel %vm73, %v229, 0
  %v357 = vsel %vm73, %v230, 0
  %v360 = vsel %vm73, %v231, 0
  %v363 = vsel %vm73, %v232, 0
  %v366 = vsel %vm73, %v233, 0
  %v369 = vsel %vm73, %v234, 0
  %v372 = vsel %vm73, %v235, 0
  %v375 = vsel %vm73, %v236, 0
  %v378 = vsel %vm73, %v237, 0
  %v381 = vsel %vm73, %v238, 0
  %383 = vmatprep.subr.mxu0 0.0
  %384 = vmatpush1.msra.mxu0 0.0
  %385 = vmatprep.subr.mxu0 0.0
  %386 = vmatpush1.msra.mxu0 0.0
  %387 = vmatprep.subr.mxu0 0.0
  %388 = vmatpush1.msra.mxu0 0.0
  %389 = vmatprep.subr.mxu0 0.0
  %390 = vmatpush1.msra.mxu0 0.0
  %391 = vmatprep.subr.mxu0 0.0
  %392 = vmatpush1.msra.mxu0 0.0
  %393 = vmatprep.subr.mxu0 0.0
  %394 = vmatpush1.msra.mxu0 0.0
  %395 = vmatprep.subr.mxu0 0.0
  %396 = vmatpush1.msra.mxu0 0.0
  %397 = vmatprep.subr.mxu0 0.0
  %398 = vmatpush1.msra.mxu0 0.0
  %399 = vmatprep.subr.mxu0 0.0
  %400 = vmatpush1.msra.mxu0 0.0
  %401 = vmatprep.subr.mxu0 0.0
  %402 = vmatpush1.msra.mxu0 0.0
  %403 = vmatprep.subr.mxu0 0.0
  %404 = vmatpush1.msra.mxu0 0.0
  %405 = vmatprep.subr.mxu0 0.0
  %406 = vmatpush1.msra.mxu0 0.0
  %407 = vmatprep.subr.mxu0 0.0
  %408 = vmatpush1.msra.mxu0 %v222
  %409 = vmatprep.subr.mxu0 0.0
  %410 = vmatpush1.msra.mxu0 %v221
  %411 = vmatprep.subr.mxu0 0.0
  %412 = vmatpush1.msra.mxu0 %v220
  %413 = vmatprep.subr.mxu0 0.0
  %414 = vmatpush1.msra.mxu0 %v219
  %415 = vmatprep.subr.mxu0 0.0
  %416 = vmatpush2.msra.mxu0 0.0
  %417 = vmatprep.subr.mxu0 0.0
  %418 = vmatpush2.msra.mxu0 0.0
  %419 = vmatprep.subr.mxu0 0.0
  %420 = vmatpush2.msra.mxu0 0.0
  %421 = vmatprep.subr.mxu0 0.0
  %422 = vmatpush2.msra.mxu0 0.0
  %423 = vmatprep.subr.mxu0 0.0
  %424 = vmatpush2.msra.mxu0 0.0
  %425 = vmatprep.subr.mxu0 0.0
  %426 = vmatpush2.msra.mxu0 0.0
  %427 = vmatprep.subr.mxu0 0.0
  %428 = vmatpush2.msra.mxu0 0.0
  %429 = vmatprep.subr.mxu0 0.0
  %430 = vmatpush2.msra.mxu0 0.0
  %431 = vmatprep.subr.mxu0 0.0
  %432 = vmatpush2.msra.mxu0 0.0
  %433 = vmatprep.subr.mxu0 0.0
  %434 = vmatpush2.msra.mxu0 0.0
  %435 = vmatprep.subr.mxu0 0.0
  %436 = vmatpush2.msra.mxu0 0.0
  %437 = vmatprep.subr.mxu0 0.0
  %438 = vmatpush2.msra.mxu0 0.0
  %439 = vmatprep.subr.mxu0 0.0
  %440 = vmatpush2.msra.mxu0 0.0
  %441 = vmatprep.subr.mxu0 0.0
  %442 = vmatpush2.msra.mxu0 0.0
  %443 = vmatprep.subr.mxu0 0.0
  %444 = vmatpush2.msra.mxu0 0.0
  %445 = vmatprep.subr.mxu0 0.0
  %446 = vmatpush2.msra.mxu0 0.0
  %447 = vmatprep.mubr.f32.mxu0 0.0
  %448 = vmatmul.mubr.f32.gmra.mxu0 %v336
  %v449 = vpop.f32.mrf.mxu0
  %v450 = vadd.f32 %v258, %v449
  %v451 = vpop.f32.mrf.mxu0
  %452 = vmatprep.mubr.f32.mxu0 0.0
  %453 = vmatmul.mubr.f32.gmra.mxu0 %v339
  %v454 = vpop.f32.mrf.mxu0
  %v455 = vadd.f32 %v263, %v454
  %v456 = vpop.f32.mrf.mxu0
  %457 = vmatprep.mubr.f32.mxu0 0.0
  %458 = vmatmul.mubr.f32.gmra.mxu0 %v342
  %v459 = vpop.f32.mrf.mxu0
  %v460 = vadd.f32 %v268, %v459
  %v461 = vpop.f32.mrf.mxu0
  %462 = vmatprep.mubr.f32.mxu0 0.0
  %463 = vmatmul.mubr.f32.gmra.mxu0 %v345
  %v464 = vpop.f32.mrf.mxu0
  %v465 = vadd.f32 %v273, %v464
  %v466 = vpop.f32.mrf.mxu0
  %467 = vmatprep.mubr.f32.mxu0 0.0
  %468 = vmatmul.mubr.f32.gmra.mxu0 %v348
  %v469 = vpop.f32.mrf.mxu0
  %v470 = vadd.f32 %v278, %v469
  %v471 = vpop.f32.mrf.mxu0
  %472 = vmatprep.mubr.f32.mxu0 0.0
  %473 = vmatmul.mubr.f32.gmra.mxu0 %v351
  %v474 = vpop.f32.mrf.mxu0
  %v475 = vadd.f32 %v283, %v474
  %v476 = vpop.f32.mrf.mxu0
  %477 = vmatprep.mubr.f32.mxu0 0.0
  %478 = vmatmul.mubr.f32.gmra.mxu0 %v354
  %v479 = vpop.f32.mrf.mxu0
  %v480 = vadd.f32 %v288, %v479
  %v481 = vpop.f32.mrf.mxu0
  %482 = vmatprep.mubr.f32.mxu0 0.0
  %483 = vmatmul.mubr.f32.gmra.mxu0 %v357
  %v484 = vpop.f32.mrf.mxu0
  %v485 = vadd.f32 %v293, %v484
  %v486 = vpop.f32.mrf.mxu0
  %487 = vmatprep.mubr.f32.mxu0 0.0
  %488 = vmatmul.mubr.f32.gmra.mxu0 %v360
  %v489 = vpop.f32.mrf.mxu0
  %v490 = vadd.f32 %v298, %v489
  %v491 = vpop.f32.mrf.mxu0
  %492 = vmatprep.mubr.f32.mxu0 0.0
  %493 = vmatmul.mubr.f32.gmra.mxu0 %v363
  %v494 = vpop.f32.mrf.mxu0
  %v495 = vadd.f32 %v303, %v494
  %v496 = vpop.f32.mrf.mxu0
  %497 = vmatprep.mubr.f32.mxu0 0.0
  %498 = vmatmul.mubr.f32.gmra.mxu0 %v366
  %v499 = vpop.f32.mrf.mxu0
  %v500 = vadd.f32 %v308, %v499
  %v501 = vpop.f32.mrf.mxu0
  %502 = vmatprep.mubr.f32.mxu0 0.0
  %503 = vmatmul.mubr.f32.gmra.mxu0 %v369
  %v504 = vpop.f32.mrf.mxu0
  %v505 = vadd.f32 %v313, %v504
  %v506 = vpop.f32.mrf.mxu0
  %507 = vmatprep.mubr.f32.mxu0 0.0
  %508 = vmatmul.mubr.f32.gmra.mxu0 %v372
  %v509 = vpop.f32.mrf.mxu0
  %v510 = vadd.f32 %v318, %v509
  %v511 = vpop.f32.mrf.mxu0
  %512 = vmatprep.mubr.f32.mxu0 0.0
  %513 = vmatmul.mubr.f32.gmra.mxu0 %v375
  %v514 = vpop.f32.mrf.mxu0
  %v515 = vadd.f32 %v323, %v514
  %v516 = vpop.f32.mrf.mxu0
  %517 = vmatprep.mubr.f32.mxu0 0.0
  %518 = vmatmul.mubr.f32.gmra.mxu0 %v378
  %v519 = vpop.f32.mrf.mxu0
  %v520 = vadd.f32 %v328, %v519
  %v521 = vpop.f32.mrf.mxu0
  %522 = vmatprep.mubr.f32.mxu0 0.0
  %523 = vmatmul.mubr.f32.gmra.mxu0 %v381
  %v524 = vpop.f32.mrf.mxu0
  %v525 = vadd.f32 %v333, %v524
  %v526 = vpop.f32.mrf.mxu0
  %527 = vdwg.mxu0
  %v528 = vadd.f32 %v450, %v455
  %v529 = vadd.f32 %v528, %v460
  %v530 = vadd.f32 %v529, %v465
  %v531 = vadd.f32 %v530, %v470
  %v532 = vadd.f32 %v531, %v475
  %v533 = vadd.f32 %v532, %v480
  %v534 = vadd.f32 %v533, %v485
  %v535 = vadd.f32 %v534, %v490
  %v536 = vadd.f32 %v535, %v495
  %v537 = vadd.f32 %v536, %v500
  %v538 = vadd.f32 %v537, %v505
  %v539 = vadd.f32 %v538, %v510
  %v540 = vadd.f32 %v539, %v515
  %v541 = vadd.f32 %v540, %v520
  %v542 = vadd.f32 %v541, %v525
  %v543 = vrot.slane %v542, 4
  %v544 = vadd.f32 %v542, %v543
  %v545 = vrot.slane %v544, 2
  %v546 = vadd.f32 %v544, %v545
  %v547 = vrot.slane %v546, 1
  %v548 = vadd.f32 %v546, %v547
  %v549 = vmul.f32 %v548, 0.01
  %v550 = vsub.f32 %v450, %v549
  %v551 = vsub.f32 %v455, %v549
  %v552 = vsub.f32 %v460, %v549
  %v553 = vsub.f32 %v465, %v549
  %v554 = vsub.f32 %v470, %v549
  %v555 = vsub.f32 %v475, %v549
  %v556 = vsub.f32 %v480, %v549
  %v557 = vsub.f32 %v485, %v549
  %v558 = vsub.f32 %v490, %v549
  %v559 = vsub.f32 %v495, %v549
  %v560 = vsub.f32 %v500, %v549
  %v561 = vsub.f32 %v505, %v549
  %v562 = vsub.f32 %v510, %v549
  %v563 = vsub.f32 %v515, %v549
  %v564 = vsub.f32 %v520, %v549
  %v565 = vsub.f32 %v525, %v549
  %v566 = vld [vmem:[%s7] sm:$0xff]
  %v567 = vld [vmem:[%s7 + $0x8] sm:$0xff]
  %v568 = vld [vmem:[%s7 + $0x10] sm:$0xff]
  %v569 = vld [vmem:[%s7 + $0x18] sm:$0xff]
  %v570 = vld [vmem:[%s7 + $0x20] sm:$0xff]
  %v571 = vld [vmem:[%s7 + $0x28] sm:$0xff]
  %v572 = vld [vmem:[%s7 + $0x30] sm:$0xff]
  %v573 = vld [vmem:[%s7 + $0x38] sm:$0xff]
  %v574 = vld [vmem:[%s7 + $0x40] sm:$0xff]
  %v575 = vld [vmem:[%s7 + $0x48] sm:$0xff]
  %v576 = vld [vmem:[%s7 + $0x50] sm:$0xff]
  %v577 = vld [vmem:[%s7 + $0x58] sm:$0xff]
  %v578 = vld [vmem:[%s7 + $0x60] sm:$0xff]
  %v579 = vld [vmem:[%s7 + $0x68] sm:$0xff]
  %v580 = vld [vmem:[%s7 + $0x70] sm:$0xff]
  %v581 = vld [vmem:[%s7 + $0x78] sm:$0xff]
  %583 = vset.pattern.permute.xlu0 0
  %584 = vperm.xlu0 %583, %v566
  %v585 = vpop.permute.xlu0 %584
  %588 = vset.pattern.permute.xlu0 0
  %589 = vperm.xlu0 %588, %v567
  %v590 = vpop.permute.xlu0 %589
  %593 = vset.pattern.permute.xlu0 0
  %594 = vperm.xlu0 %593, %v568
  %v595 = vpop.permute.xlu0 %594
  %598 = vset.pattern.permute.xlu0 0
  %599 = vperm.xlu0 %598, %v569
  %v600 = vpop.permute.xlu0 %599
  %603 = vset.pattern.permute.xlu0 0
  %604 = vperm.xlu0 %603, %v570
  %v605 = vpop.permute.xlu0 %604
  %608 = vset.pattern.permute.xlu0 0
  %609 = vperm.xlu0 %608, %v571
  %v610 = vpop.permute.xlu0 %609
  %613 = vset.pattern.permute.xlu0 0
  %614 = vperm.xlu0 %613, %v572
  %v615 = vpop.permute.xlu0 %614
  %618 = vset.pattern.permute.xlu0 0
  %619 = vperm.xlu0 %618, %v573
  %v620 = vpop.permute.xlu0 %619
  %623 = vset.pattern.permute.xlu0 0
  %624 = vperm.xlu0 %623, %v574
  %v625 = vpop.permute.xlu0 %624
  %628 = vset.pattern.permute.xlu0 0
  %629 = vperm.xlu0 %628, %v575
  %v630 = vpop.permute.xlu0 %629
  %633 = vset.pattern.permute.xlu0 0
  %634 = vperm.xlu0 %633, %v576
  %v635 = vpop.permute.xlu0 %634
  %638 = vset.pattern.permute.xlu0 0
  %639 = vperm.xlu0 %638, %v577
  %v640 = vpop.permute.xlu0 %639
  %643 = vset.pattern.permute.xlu0 0
  %644 = vperm.xlu0 %643, %v578
  %v645 = vpop.permute.xlu0 %644
  %648 = vset.pattern.permute.xlu0 0
  %649 = vperm.xlu0 %648, %v579
  %v650 = vpop.permute.xlu0 %649
  %653 = vset.pattern.permute.xlu0 0
  %654 = vperm.xlu0 %653, %v580
  %v655 = vpop.permute.xlu0 %654
  %658 = vset.pattern.permute.xlu0 0
  %659 = vperm.xlu0 %658, %v581
  %v660 = vpop.permute.xlu0 %659
  %v662 = vmul.f32 %v550, %v585
  %v663 = vmul.f32 %v551, %v590
  %v664 = vmul.f32 %v552, %v595
  %v665 = vmul.f32 %v553, %v600
  %v666 = vmul.f32 %v554, %v605
  %v667 = vmul.f32 %v555, %v610
  %v668 = vmul.f32 %v556, %v615
  %v669 = vmul.f32 %v557, %v620
  %v670 = vmul.f32 %v558, %v625
  %v671 = vmul.f32 %v559, %v630
  %v672 = vmul.f32 %v560, %v635
  %v673 = vmul.f32 %v561, %v640
  %v674 = vmul.f32 %v562, %v645
  %v675 = vmul.f32 %v563, %v650
  %v676 = vmul.f32 %v564, %v655
  %v677 = vmul.f32 %v565, %v660
  %v678 = vmul.f32 %v662, %v662
  %v679 = vmul.f32 %v663, %v663
  %v680 = vmul.f32 %v664, %v664
  %v681 = vmul.f32 %v665, %v665
  %v682 = vmul.f32 %v666, %v666
  %v683 = vmul.f32 %v667, %v667
  %v684 = vmul.f32 %v668, %v668
  %v685 = vmul.f32 %v669, %v669
  %v686 = vmul.f32 %v670, %v670
  %v687 = vmul.f32 %v671, %v671
  %v688 = vmul.f32 %v672, %v672
  %v689 = vmul.f32 %v673, %v673
  %v690 = vmul.f32 %v674, %v674
  %v691 = vmul.f32 %v675, %v675
  %v692 = vmul.f32 %v676, %v676
  %v693 = vmul.f32 %v677, %v677
  %v694 = vadd.f32 %v678, %v679
  %v695 = vadd.f32 %v694, %v680
  %v696 = vadd.f32 %v695, %v681
  %v697 = vadd.f32 %v696, %v682
  %v698 = vadd.f32 %v697, %v683
  %v699 = vadd.f32 %v698, %v684
  %v700 = vadd.f32 %v699, %v685
  %v701 = vadd.f32 %v700, %v686
  %v702 = vadd.f32 %v701, %v687
  %v703 = vadd.f32 %v702, %v688
  %v704 = vadd.f32 %v703, %v689
  %v705 = vadd.f32 %v704, %v690
  %v706 = vadd.f32 %v705, %v691
  %v707 = vadd.f32 %v706, %v692
  %v708 = vadd.f32 %v707, %v693
  %v709 = vrot.slane %v708, 4
  %v710 = vadd.f32 %v708, %v709
  %v711 = vrot.slane %v710, 2
  %v712 = vadd.f32 %v710, %v711
  %v713 = vrot.slane %v712, 1
  %v714 = vadd.f32 %v712, %v713
  %v715 = vmul.f32 %v714, 0.01
  %v716 = vadd.f32 %v715, 1e-05
  %v717 = vrsqrt.pop %v716
  %v718 = vld [vmem:[%s5] sm:$0xff]
  %v719 = vld [vmem:[%s5 + $0x8] sm:$0xff]
  %720 = vmatprep.subr.mxu0 0.0
  %721 = vmatpush1.msra.mxu0 %v677
  %722 = vmatprep.subr.mxu0 0.0
  %723 = vmatpush1.msra.mxu0 %v676
  %724 = vmatprep.subr.mxu0 0.0
  %725 = vmatpush1.msra.mxu0 %v675
  %726 = vmatprep.subr.mxu0 0.0
  %727 = vmatpush1.msra.mxu0 %v674
  %728 = vmatprep.subr.mxu0 0.0
  %729 = vmatpush1.msra.mxu0 %v673
  %730 = vmatprep.subr.mxu0 0.0
  %731 = vmatpush1.msra.mxu0 %v672
  %732 = vmatprep.subr.mxu0 0.0
  %733 = vmatpush1.msra.mxu0 %v671
  %734 = vmatprep.subr.mxu0 0.0
  %735 = vmatpush1.msra.mxu0 %v670
  %736 = vmatprep.subr.mxu0 0.0
  %737 = vmatpush1.msra.mxu0 %v669
  %738 = vmatprep.subr.mxu0 0.0
  %739 = vmatpush1.msra.mxu0 %v668
  %740 = vmatprep.subr.mxu0 0.0
  %741 = vmatpush1.msra.mxu0 %v667
  %742 = vmatprep.subr.mxu0 0.0
  %743 = vmatpush1.msra.mxu0 %v666
  %744 = vmatprep.subr.mxu0 0.0
  %745 = vmatpush1.msra.mxu0 %v665
  %746 = vmatprep.subr.mxu0 0.0
  %747 = vmatpush1.msra.mxu0 %v664
  %748 = vmatprep.subr.mxu0 0.0
  %749 = vmatpush1.msra.mxu0 %v663
  %750 = vmatprep.subr.mxu0 0.0
  %751 = vmatpush1.msra.mxu0 %v662
  %752 = vmatprep.subr.mxu0 0.0
  %753 = vmatpush2.msra.mxu0 0.0
  %754 = vmatprep.subr.mxu0 0.0
  %755 = vmatpush2.msra.mxu0 0.0
  %756 = vmatprep.subr.mxu0 0.0
  %757 = vmatpush2.msra.mxu0 0.0
  %758 = vmatprep.subr.mxu0 0.0
  %759 = vmatpush2.msra.mxu0 0.0
  %760 = vmatprep.subr.mxu0 0.0
  %761 = vmatpush2.msra.mxu0 0.0
  %762 = vmatprep.subr.mxu0 0.0
  %763 = vmatpush2.msra.mxu0 0.0
  %764 = vmatprep.subr.mxu0 0.0
  %765 = vmatpush2.msra.mxu0 0.0
  %766 = vmatprep.subr.mxu0 0.0
  %767 = vmatpush2.msra.mxu0 0.0
  %768 = vmatprep.subr.mxu0 0.0
  %769 = vmatpush2.msra.mxu0 0.0
  %770 = vmatprep.subr.mxu0 0.0
  %771 = vmatpush2.msra.mxu0 0.0
  %772 = vmatprep.subr.mxu0 0.0
  %773 = vmatpush2.msra.mxu0 0.0
  %774 = vmatprep.subr.mxu0 0.0
  %775 = vmatpush2.msra.mxu0 0.0
  %776 = vmatprep.subr.mxu0 0.0
  %777 = vmatpush2.msra.mxu0 0.0
  %778 = vmatprep.subr.mxu0 0.0
  %779 = vmatpush2.msra.mxu0 0.0
  %780 = vmatprep.subr.mxu0 0.0
  %781 = vmatpush2.msra.mxu0 0.0
  %782 = vmatprep.subr.mxu0 0.0
  %783 = vmatpush2.msra.mxu0 0.0
  %784 = vmatprep.mubr.f32.mxu0 0.0
  %785 = vmatmul.mubr.f32.gmra.mxu0 %v718
  %v786 = vpop.f32.mrf.mxu0
  %v787 = vadd.f32 0.0, %v786
  %v788 = vpop.f32.mrf.mxu0
  %789 = vmatprep.mubr.f32.mxu0 0.0
  %790 = vmatmul.mubr.f32.gmra.mxu0 %v719
  %v791 = vpop.f32.mrf.mxu0
  %v792 = vadd.f32 0.0, %v791
  %v793 = vpop.f32.mrf.mxu0
  %794 = vdwg.mxu0
  %v795 = vmul.f32 %v787, %v717
  %v796 = vmul.f32 %v792, %v717
  %v797 = vld [vmem:[%s6] sm:$0xff]
  %v798 = vld [vmem:[%s6 + $0x8] sm:$0xff]
  %800 = vset.pattern.permute.xlu0 0
  %801 = vperm.xlu0 %800, %v797
  %v802 = vpop.permute.xlu0 %801
  %805 = vset.pattern.permute.xlu0 0
  %806 = vperm.xlu0 %805, %v798
  %v807 = vpop.permute.xlu0 %806
  %v809 = vadd.f32 %v795, %v802
  %v810 = vadd.f32 %v796, %v807
  %811 = vst [vmem:[%s8] sm:$0xff] %v809
  %812 = vst [vmem:[%s8 + $0x8] sm:$0xff] %v810
  // Predicated region
  $region34: #{thdlin_forward.1} parent=0 // pred_check
    _
  $region35: #{thdlin_forward.1} parent=0 // pred_check_branch
    %814 = sbr.rel (0) target = $region37
  $region36: #{thdlin_forward.1} parent=0 // pred_region
    _
  $region37: #{thdlin_forward.1} parent=0 // pred_fallthru
    _
  // Predicated region
  $region38: #{thdlin_forward.1} parent=0 // pred_check
    _
  $region39: #{thdlin_forward.1} parent=0 // pred_check_branch
    %816 = sbr.rel (0) target = $region41
  $region40: #{thdlin_forward.1} parent=0 // pred_region
    _
  $region41: #{thdlin_forward.1} parent=0 // pred_fallthru
    _

</llo_original>
